<compile_context>
chip_gen: v7x
topology: tpu7x:2x2x1
jax: 0.10.0
libtpu: 0.0.40
codegen_flags: <defaults>
</compile_context>

<pallas_src>
import jax
import jax.numpy as jnp
import numpy as np
from jax.experimental import pallas as pl
from jax.experimental.pallas import tpu as pltpu

F_REAL = 2          # n_features: each point is 2-D
H_REAL = 2          # hidden = [0.0, 0.0] -> hidden size 2
N_POINTS = 4        # "four_points" (forward only touches indices 0 and 1)
INPUT_STEPS = 2     # encoder unrolled 2 steps
TARGET_LEN = 2      # decoder unrolled 2 steps

LANES = 128
W_ROWS = 128                    # fused weight occupies slab rows 0..127
PARAM_ROWS = W_ROWS + 8         # + one (8,128) block holding the bias rows
ROW_BE = W_ROWS + 0             # encoder hidden bias row (lanes 2-3)
ROW_BD = W_ROWS + 1             # decoder hidden bias row (lanes 4-5)
ROW_BO = W_ROWS + 2             # decoder output bias row (lanes 0-1)

# Lane layout of the (·,128) state row:
#   lanes 0-1 : current input point x
#   lanes 2-3 : encoder hidden (also the encoder->decoder handoff slot)
#   lanes 4-5 : decoder hidden


def _encdec_kernel(slab_ref, pts_ref, y_ref):
    f32 = jnp.float32
    W = slab_ref[0:W_ROWS, :]                    # (128,128) fused weight
    b_e = slab_ref[ROW_BE:ROW_BE + 1, :]         # enc hidden bias (lanes 2-3)
    b_d = slab_ref[ROW_BD:ROW_BD + 1, :]         # dec hidden bias (lanes 4-5)
    b_o = slab_ref[ROW_BO:ROW_BO + 1, :]         # dec output bias (lanes 0-1)

    lane = jax.lax.broadcasted_iota(jnp.int32, (8, LANES), 1)
    m_x = lane < F_REAL                          # lanes 0-1
    m_he = (lane >= 2) & (lane < 4)              # encoder hidden slot
    m_hd = (lane >= 4) & (lane < 6)              # decoder hidden slot

    def x_row(i):
        # point i, replicated over the 8 sublanes, masked to lanes 0-1
        return jnp.where(m_x, jnp.broadcast_to(pts_ref[i:i + 1, :], (8, LANES)), 0.0)

    # ---- encoder: 2 steps over four_points[0], four_points[1] ----
    h = jnp.zeros((8, LANES), f32)               # hidden = [0.0, 0.0]
    for i in range(INPUT_STEPS):
        z = x_row(i) + h                         # x in lanes 0-1, h in lanes 2-3
        r = jnp.dot(z, W, preferred_element_type=f32)
        h = jnp.where(m_he, jnp.tanh(r + b_e), 0.0)
        # (encoder output head is dead in the module forward -> not computed)

    # ---- decoder: 2 autoregressive steps seeded with four_points[1] ----
    # First step reads the encoder hidden from lanes 2-3 (W_hh_dec is duplicated
    # there), subsequent steps read it from lanes 4-5 -> no lane movement needed.
    x = x_row(1)
    ys = []
    for _ in range(TARGET_LEN):
        z = x + h
        r = jnp.dot(z, W, preferred_element_type=f32)
        h = jnp.where(m_hd, jnp.tanh(r + b_d), 0.0)      # new hidden, lanes 4-5
        r2 = jnp.dot(h, W, preferred_element_type=f32)   # output head
        x = jnp.where(m_x, r2 + b_o, 0.0)                # output point, lanes 0-1
        ys.append(x)

    # Single unmasked full-tile store: row 0 = y_hat[0], row 1 = y_hat[1].
    sub = jax.lax.broadcasted_iota(jnp.int32, (8, LANES), 0)
    y_ref[...] = jnp.where(sub == 0, ys[0], jnp.where(sub == 1, ys[1], 0.0))


def pack_params(enc_params, dec_params):
    """Pack all *live* parameters into one (136,128) f32 slab. Done ONCE."""
    e_wih, e_whh, e_bh, _e_who, _e_bo = [np.asarray(p, np.float32) for p in enc_params]
    d_wih, d_whh, d_bh, d_who, d_bo = [np.asarray(p, np.float32) for p in dec_params]

    slab = np.zeros((PARAM_ROWS, LANES), np.float32)
    W = slab[:W_ROWS]
    # encoder recurrence -> output columns 2-3
    W[0:2, 2:4] = e_wih          # x (lanes 0-1)
    W[2:4, 2:4] = e_whh          # enc hidden (lanes 2-3)
    # decoder recurrence -> output columns 4-5
    W[0:2, 4:6] = d_wih          # x (lanes 0-1)
    W[2:4, 4:6] = d_whh          # dec hidden read from handoff slot (lanes 2-3)
    W[4:6, 4:6] = d_whh          # dec hidden read from own slot (lanes 4-5)
    # decoder output head -> output columns 0-1
    W[4:6, 0:2] = d_who          # dec hidden (lanes 4-5)
    # bias rows, pre-placed at their target lanes
    slab[ROW_BE, 2:4] = e_bh
    slab[ROW_BD, 4:6] = d_bh
    slab[ROW_BO, 0:2] = d_bo
    return jnp.asarray(slab)


@jax.jit
def encoder_decoder_forward(param_slab, four_points):
    """param_slab: (136,128) f32 (from pack_params).  four_points: (4,2) f32.
    Returns (2, 2): the two decoder output points."""
    pts = jnp.zeros((8, LANES), jnp.float32)
    pts = pts.at[:N_POINTS, :F_REAL].set(four_points.astype(jnp.float32))

    vmem = pl.BlockSpec(memory_space=pltpu.MemorySpace.VMEM)
    y = pl.pallas_call(
        _encdec_kernel,
        out_shape=jax.ShapeDtypeStruct((8, LANES), jnp.float32),
        in_specs=[vmem, vmem],
        out_specs=vmem,
    )(param_slab, pts)
    return y[:TARGET_LEN, :F_REAL]


def _reference_forward(four_points, enc_params, dec_params):
    """Pure-numpy replica of the module forward for verification."""
    e_wih, e_whh, e_bh, e_who, e_bo = [np.asarray(p, np.float32) for p in enc_params]
    d_wih, d_whh, d_bh, d_who, d_bo = [np.asarray(p, np.float32) for p in dec_params]
    fp = np.asarray(four_points, np.float32)

    hidden = np.zeros((H_REAL,), np.float32)          # [0.0, 0.0]
    for i in range(INPUT_STEPS):
        x = fp[i]
        hidden = np.tanh(x @ e_wih + hidden @ e_whh + e_bh)
        _ = hidden @ e_who + e_bo                     # discarded output_point
    y_hat = []
    x = fp[1]
    for _ in range(TARGET_LEN):
        hidden = np.tanh(x @ d_wih + hidden @ d_whh + d_bh)
        out = hidden @ d_who + d_bo
        y_hat.append(out)
        x = out
    return y_hat


def _make_params(key):
    ks = jax.random.split(key, 10)
    scale = 0.5

    def mat(k, shape):
        return scale * jax.random.normal(k, shape, dtype=jnp.float32)

    enc = (mat(ks[0], (F_REAL, H_REAL)),   # W_ih
           mat(ks[1], (H_REAL, H_REAL)),   # W_hh
           mat(ks[2], (H_REAL,)),          # b_h
           mat(ks[3], (H_REAL, F_REAL)),   # W_ho (encoder head; result is dead)
           mat(ks[4], (F_REAL,)))          # b_o
    dec = (mat(ks[5], (F_REAL, H_REAL)),
           mat(ks[6], (H_REAL, H_REAL)),
           mat(ks[7], (H_REAL,)),
           mat(ks[8], (H_REAL, F_REAL)),
           mat(ks[9], (F_REAL,)))
    return enc, dec


if __name__ == "__main__":
    key = jax.random.PRNGKey(0)
    k_params, k_input = jax.random.split(key)

    enc_params, dec_params = _make_params(k_params)
    four_points = jax.random.normal(k_input, (N_POINTS, F_REAL), dtype=jnp.float32)

    param_slab = pack_params(enc_params, dec_params)   # built once, reused per call

    y_hat = encoder_decoder_forward(param_slab, four_points)
    y_hat = jax.block_until_ready(y_hat)               # (2, 2)

    y_ref = _reference_forward(np.asarray(four_points), enc_params, dec_params)
    for i, ref in enumerate(y_ref):
        np.testing.assert_allclose(np.asarray(y_hat[i]), ref, rtol=1e-5, atol=1e-5)

    print("KERNEL_OK")
</pallas_src>

<mosaic_0001>
module attributes {stable_mosaic.version = 11 : i64} {
  func.func @_encdec_kernel(%arg0: memref<136x128xf32, #tpu.memory_space<vmem>>, %arg1: memref<8x128xf32, #tpu.memory_space<vmem>>, %arg2: memref<8x128xf32, #tpu.memory_space<vmem>>) attributes {dimension_semantics = [], scalar_prefetch = 0 : i64, scratch_operands = 0 : i64, tpu.core_type = #tpu.core_type<tc>} {
    %c0 = arith.constant 0 : index
    %c0_0 = arith.constant 0 : index
    %0 = vector.load %arg0[%c0, %c0_0] : memref<136x128xf32, #tpu.memory_space<vmem>>, vector<128x128xf32>
    %c128 = arith.constant 128 : index
    %c0_1 = arith.constant 0 : index
    %1 = vector.load %arg0[%c128, %c0_1] : memref<136x128xf32, #tpu.memory_space<vmem>>, vector<1x128xf32>
    %c129 = arith.constant 129 : index
    %c0_2 = arith.constant 0 : index
    %2 = vector.load %arg0[%c129, %c0_2] : memref<136x128xf32, #tpu.memory_space<vmem>>, vector<1x128xf32>
    %c130 = arith.constant 130 : index
    %c0_3 = arith.constant 0 : index
    %3 = vector.load %arg0[%c130, %c0_3] : memref<136x128xf32, #tpu.memory_space<vmem>>, vector<1x128xf32>
    %4 = tpu.iota {dimensions = array<i32: 1>} : vector<8x128xi32>
    %c2_i32 = arith.constant 2 : i32
    %5 = vector.broadcast %c2_i32 : i32 to vector<8x128xi32>
    %6 = arith.cmpi slt, %4, %5 : vector<8x128xi32>
    %c2_i32_4 = arith.constant 2 : i32
    %7 = vector.broadcast %c2_i32_4 : i32 to vector<8x128xi32>
    %8 = arith.cmpi sge, %4, %7 : vector<8x128xi32>
    %c4_i32 = arith.constant 4 : i32
    %9 = vector.broadcast %c4_i32 : i32 to vector<8x128xi32>
    %10 = arith.cmpi slt, %4, %9 : vector<8x128xi32>
    %11 = arith.andi %8, %10 : vector<8x128xi1>
    %c4_i32_5 = arith.constant 4 : i32
    %12 = vector.broadcast %c4_i32_5 : i32 to vector<8x128xi32>
    %13 = arith.cmpi sge, %4, %12 : vector<8x128xi32>
    %c6_i32 = arith.constant 6 : i32
    %14 = vector.broadcast %c6_i32 : i32 to vector<8x128xi32>
    %15 = arith.cmpi slt, %4, %14 : vector<8x128xi32>
    %16 = arith.andi %13, %15 : vector<8x128xi1>
    %cst = arith.constant 0.000000e+00 : f32
    %17 = vector.broadcast %cst : f32 to vector<8x128xf32>
    %c0_6 = arith.constant 0 : index
    %c0_7 = arith.constant 0 : index
    %18 = vector.load %arg1[%c0_6, %c0_7] : memref<8x128xf32, #tpu.memory_space<vmem>>, vector<1x128xf32>
    %19 = vector.shape_cast %18 : vector<1x128xf32> to vector<1x128xf32>
    %20 = vector.broadcast %19 : vector<1x128xf32> to vector<8x128xf32>
    %cst_8 = arith.constant 0.000000e+00 : f32
    %21 = vector.broadcast %cst_8 : f32 to vector<8x128xf32>
    %22 = arith.select %6, %20, %21 : vector<8x128xi1>, vector<8x128xf32>
    %23 = arith.addf %22, %17 : vector<8x128xf32>
    %cst_9 = arith.constant dense<0.000000e+00> : vector<8x128xf32>
    %24 = tpu.matmul %23, %0, %cst_9 {dimension_numbers = #tpu.dot_dimension_numbers<[1], [0], [0], [1], [0, 0, 1, 1], [], []>} : vector<8x128xf32>, vector<128x128xf32>, vector<8x128xf32> -> vector<8x128xf32>
    %25 = vector.broadcast %1 : vector<1x128xf32> to vector<8x128xf32>
    %26 = arith.addf %24, %25 : vector<8x128xf32>
    %27 = math.tanh %26 : vector<8x128xf32>
    %cst_10 = arith.constant 0.000000e+00 : f32
    %28 = vector.broadcast %cst_10 : f32 to vector<8x128xf32>
    %29 = arith.select %11, %27, %28 : vector<8x128xi1>, vector<8x128xf32>
    %c1 = arith.constant 1 : index
    %c0_11 = arith.constant 0 : index
    %30 = vector.load %arg1[%c1, %c0_11] : memref<8x128xf32, #tpu.memory_space<vmem>>, vector<1x128xf32>
    %31 = vector.shape_cast %30 : vector<1x128xf32> to vector<1x128xf32>
    %32 = vector.broadcast %31 : vector<1x128xf32> to vector<8x128xf32>
    %cst_12 = arith.constant 0.000000e+00 : f32
    %33 = vector.broadcast %cst_12 : f32 to vector<8x128xf32>
    %34 = arith.select %6, %32, %33 : vector<8x128xi1>, vector<8x128xf32>
    %35 = arith.addf %34, %29 : vector<8x128xf32>
    %cst_13 = arith.constant dense<0.000000e+00> : vector<8x128xf32>
    %36 = tpu.matmul %35, %0, %cst_13 {dimension_numbers = #tpu.dot_dimension_numbers<[1], [0], [0], [1], [0, 0, 1, 1], [], []>} : vector<8x128xf32>, vector<128x128xf32>, vector<8x128xf32> -> vector<8x128xf32>
    %37 = vector.broadcast %1 : vector<1x128xf32> to vector<8x128xf32>
    %38 = arith.addf %36, %37 : vector<8x128xf32>
    %39 = math.tanh %38 : vector<8x128xf32>
    %cst_14 = arith.constant 0.000000e+00 : f32
    %40 = vector.broadcast %cst_14 : f32 to vector<8x128xf32>
    %41 = arith.select %11, %39, %40 : vector<8x128xi1>, vector<8x128xf32>
    %c1_15 = arith.constant 1 : index
    %c0_16 = arith.constant 0 : index
    %42 = vector.load %arg1[%c1_15, %c0_16] : memref<8x128xf32, #tpu.memory_space<vmem>>, vector<1x128xf32>
    %43 = vector.shape_cast %42 : vector<1x128xf32> to vector<1x128xf32>
    %44 = vector.broadcast %43 : vector<1x128xf32> to vector<8x128xf32>
    %cst_17 = arith.constant 0.000000e+00 : f32
    %45 = vector.broadcast %cst_17 : f32 to vector<8x128xf32>
    %46 = arith.select %6, %44, %45 : vector<8x128xi1>, vector<8x128xf32>
    %47 = arith.addf %46, %41 : vector<8x128xf32>
    %cst_18 = arith.constant dense<0.000000e+00> : vector<8x128xf32>
    %48 = tpu.matmul %47, %0, %cst_18 {dimension_numbers = #tpu.dot_dimension_numbers<[1], [0], [0], [1], [0, 0, 1, 1], [], []>} : vector<8x128xf32>, vector<128x128xf32>, vector<8x128xf32> -> vector<8x128xf32>
    %49 = vector.broadcast %2 : vector<1x128xf32> to vector<8x128xf32>
    %50 = arith.addf %48, %49 : vector<8x128xf32>
    %51 = math.tanh %50 : vector<8x128xf32>
    %cst_19 = arith.constant 0.000000e+00 : f32
    %52 = vector.broadcast %cst_19 : f32 to vector<8x128xf32>
    %53 = arith.select %16, %51, %52 : vector<8x128xi1>, vector<8x128xf32>
    %cst_20 = arith.constant dense<0.000000e+00> : vector<8x128xf32>
    %54 = tpu.matmul %53, %0, %cst_20 {dimension_numbers = #tpu.dot_dimension_numbers<[1], [0], [0], [1], [0, 0, 1, 1], [], []>} : vector<8x128xf32>, vector<128x128xf32>, vector<8x128xf32> -> vector<8x128xf32>
    %55 = vector.broadcast %3 : vector<1x128xf32> to vector<8x128xf32>
    %56 = arith.addf %54, %55 : vector<8x128xf32>
    %cst_21 = arith.constant 0.000000e+00 : f32
    %57 = vector.broadcast %cst_21 : f32 to vector<8x128xf32>
    %58 = arith.select %6, %56, %57 : vector<8x128xi1>, vector<8x128xf32>
    %59 = arith.addf %58, %53 : vector<8x128xf32>
    %cst_22 = arith.constant dense<0.000000e+00> : vector<8x128xf32>
    %60 = tpu.matmul %59, %0, %cst_22 {dimension_numbers = #tpu.dot_dimension_numbers<[1], [0], [0], [1], [0, 0, 1, 1], [], []>} : vector<8x128xf32>, vector<128x128xf32>, vector<8x128xf32> -> vector<8x128xf32>
    %61 = vector.broadcast %2 : vector<1x128xf32> to vector<8x128xf32>
    %62 = arith.addf %60, %61 : vector<8x128xf32>
    %63 = math.tanh %62 : vector<8x128xf32>
    %cst_23 = arith.constant 0.000000e+00 : f32
    %64 = vector.broadcast %cst_23 : f32 to vector<8x128xf32>
    %65 = arith.select %16, %63, %64 : vector<8x128xi1>, vector<8x128xf32>
    %cst_24 = arith.constant dense<0.000000e+00> : vector<8x128xf32>
    %66 = tpu.matmul %65, %0, %cst_24 {dimension_numbers = #tpu.dot_dimension_numbers<[1], [0], [0], [1], [0, 0, 1, 1], [], []>} : vector<8x128xf32>, vector<128x128xf32>, vector<8x128xf32> -> vector<8x128xf32>
    %67 = vector.broadcast %3 : vector<1x128xf32> to vector<8x128xf32>
    %68 = arith.addf %66, %67 : vector<8x128xf32>
    %cst_25 = arith.constant 0.000000e+00 : f32
    %69 = vector.broadcast %cst_25 : f32 to vector<8x128xf32>
    %70 = arith.select %6, %68, %69 : vector<8x128xi1>, vector<8x128xf32>
    %71 = tpu.iota {dimensions = array<i32: 0>} : vector<8x128xi32>
    %c0_i32 = arith.constant 0 : i32
    %72 = vector.broadcast %c0_i32 : i32 to vector<8x128xi32>
    %73 = arith.cmpi eq, %71, %72 : vector<8x128xi32>
    %c1_i32 = arith.constant 1 : i32
    %74 = vector.broadcast %c1_i32 : i32 to vector<8x128xi32>
    %75 = arith.cmpi eq, %71, %74 : vector<8x128xi32>
    %cst_26 = arith.constant 0.000000e+00 : f32
    %76 = vector.broadcast %cst_26 : f32 to vector<8x128xf32>
    %77 = arith.select %75, %70, %76 : vector<8x128xi1>, vector<8x128xf32>
    %78 = arith.select %73, %58, %77 : vector<8x128xi1>, vector<8x128xf32>
    %c0_27 = arith.constant 0 : index
    %c0_28 = arith.constant 0 : index
    %79 = vector.load %arg2[%c0_27, %c0_28] : memref<8x128xf32, #tpu.memory_space<vmem>>, vector<8x128xf32>
    tpu.vector_store %arg2[%c0_27, %c0_28], %78 {strides = array<i32>} : memref<8x128xf32, #tpu.memory_space<vmem>>, vector<8x128xf32>,
    return
  }
}

</mosaic_0001>

<llo_original>
// kernel: encoder_decoder_forward.1
$region0: #{encoder_decoder_forward.1}
  #allocation0 [shape = 'u32[]', space=smem, size = 0x4, offset = 0x4, fixed_abs, tag = 'smem constant byte address 0x4 - core index']
  #allocation1 [shape = 'u32[144,128]{1,0:T(1,128)}', space=vmem, size = 0x12000, scoped, tag = 'internal scratch']
  %s0 = inlined_call_operand.hbm [shape: f32[136,128], index: 0, kind: input, shape index: {}]
  %s1 = inlined_call_operand.vmem [shape: f32[8,128], index: 1, kind: input, shape index: {}]
  %s2 = inlined_call_operand.vmem [shape: f32[8,128], index: 2, kind: output, shape index: {}]
  %s3 = sld [smem:[#allocation0]]
  $region22: #{encoder_decoder_forward.1} parent=0
    _
  %s5 = ssub.s32 1, %s3
  %s6 = scalar_select 0, %s5, %s3
  $region1: #{encoder_decoder_forward.1} parent=0
    #allocation2 [shape = 'u8[69632]{0}', space=vmem, size = 0x11000, scoped, tag = 'input window, operand 0, single buffered']
    #allocation3 [shape = 's32[1]{0}', space=sflag, size = 0x4, scoped, tag = 'scoped memory for encoder_decoder_forward.1']
    %7 = vsyncpa [#allocation3], 0
    // Predicated region
    $region2: #{encoder_decoder_forward.1} parent=1 // pred_check
      _
    $region3: #{encoder_decoder_forward.1} parent=1 // pred_check_branch
      %9 = sbr.rel (0) target = $region5
    $region4: #{encoder_decoder_forward.1} parent=1 // pred_region
      %s11 = ssub.s32 2176, 2176
      %12 = vsyncadd [#allocation3], %s11
      %s13 = sshll.u32 [#allocation2], 4
      %s14 = int_to_ptr.vmem [resolvable:$true] %s13
      %19 = dma.hbm_to_vmem [thread:$0]  %s0, 2176, %s14, [#allocation3], 128, 128, 8
    $region5: #{encoder_decoder_forward.1} parent=1 // pred_fallthru
      _
    // Predicated region
    $region6: #{encoder_decoder_forward.1} parent=1 // pred_check
      _
    $region7: #{encoder_decoder_forward.1} parent=1 // pred_check_branch
      %21 = sbr.rel (0) target = $region9
    $region8: #{encoder_decoder_forward.1} parent=1 // pred_region
      _
    $region9: #{encoder_decoder_forward.1} parent=1 // pred_fallthru
      _
    // Predicated region
    $region10: #{encoder_decoder_forward.1} parent=1 // pred_check
      _
    $region11: #{encoder_decoder_forward.1} parent=1 // pred_check_branch
      %23 = sbr.rel (0) target = $region13
    $region12: #{encoder_decoder_forward.1} parent=1 // pred_region
      %24 = dma.done [#allocation3], 2176
    $region13: #{encoder_decoder_forward.1} parent=1 // pred_fallthru
      _
    %v25 = vld [vmem:[#allocation2] sm:$0xff]
    %v26 = vld [vmem:[#allocation2 + $0x8] sm:$0xff]
    %v27 = vld [vmem:[#allocation2 + $0x10] sm:$0xff]
    %v28 = vld [vmem:[#allocation2 + $0x18] sm:$0xff]
    %v29 = vld [vmem:[#allocation2 + $0x20] sm:$0xff]
    %v30 = vld [vmem:[#allocation2 + $0x28] sm:$0xff]
    %v31 = vld [vmem:[#allocation2 + $0x30] sm:$0xff]
    %v32 = vld [vmem:[#allocation2 + $0x38] sm:$0xff]
    %v33 = vld [vmem:[#allocation2 + $0x40] sm:$0xff]
    %v34 = vld [vmem:[#allocation2 + $0x48] sm:$0xff]
    %v35 = vld [vmem:[#allocation2 + $0x50] sm:$0xff]
    %v36 = vld [vmem:[#allocation2 + $0x58] sm:$0xff]
    %v37 = vld [vmem:[#allocation2 + $0x60] sm:$0xff]
    %v38 = vld [vmem:[#allocation2 + $0x68] sm:$0xff]
    %v39 = vld [vmem:[#allocation2 + $0x70] sm:$0xff]
    %v40 = vld [vmem:[#allocation2 + $0x78] sm:$0xff]
    %v41 = vld [vmem:[#allocation2 + $0x80] sm:$0x1]
    %v42 = vld [vmem:[#allocation2 + $0x81] sm:$0x1]
    %v43 = vld [vmem:[#allocation2 + $0x82] sm:$0x1]
    %v44 = vlaneseq
    %v45 = vand.u32 %v44, 127
    %vm46 = vcmp.lt.s32.totalorder %v45, 2
    %vm47 = vcmp.ge.s32.totalorder %v45, 2
    %vm48 = vcmp.lt.s32.totalorder %v45, 4
    %vm49 = vmand %vm47, %vm48
    %vm50 = vcmp.ge.s32.totalorder %v45, 4
    %vm51 = vcmp.lt.s32.totalorder %v45, 6
    %vm52 = vmand %vm50, %vm51
    %v53 = vld [vmem:[%s1] sm:$0x1]
    %v54 = vlaneseq
    %v55 = vshrl.u32 %v54, 7
    %v56 = vsub.s32 0, %v55
    %v57 = vrot.slane %v53, %v56
    %v58 = vsel %vm46, %v57, 0.0
    %v59 = vadd.f32 %v58, 0.0
    %v60 = vlaneseq
    %v61 = vshrl.u32 %v60, 7
    %v62 = vsub.s32 0, %v61
    %v63 = vrot.slane %v41, %v62
    %64 = vmatprep.subr.mxu0 0.0
    %65 = vmatpush1.msra.mxu0 %v25
    %66 = vmatprep.subr.mxu0 0.0
    %67 = vmatpush1.msra.mxu0 %v26
    %68 = vmatprep.subr.mxu0 0.0
    %69 = vmatpush1.msra.mxu0 %v27
    %70 = vmatprep.subr.mxu0 0.0
    %71 = vmatpush1.msra.mxu0 %v28
    %72 = vmatprep.subr.mxu0 0.0
    %73 = vmatpush1.msra.mxu0 %v29
    %74 = vmatprep.subr.mxu0 0.0
    %75 = vmatpush1.msra.mxu0 %v30
    %76 = vmatprep.subr.mxu0 0.0
    %77 = vmatpush1.msra.mxu0 %v31
    %78 = vmatprep.subr.mxu0 0.0
    %79 = vmatpush1.msra.mxu0 %v32
    %80 = vmatprep.subr.mxu0 0.0
    %81 = vmatpush1.msra.mxu0 %v33
    %82 = vmatprep.subr.mxu0 0.0
    %83 = vmatpush1.msra.mxu0 %v34
    %84 = vmatprep.subr.mxu0 0.0
    %85 = vmatpush1.msra.mxu0 %v35
    %86 = vmatprep.subr.mxu0 0.0
    %87 = vmatpush1.msra.mxu0 %v36
    %88 = vmatprep.subr.mxu0 0.0
    %89 = vmatpush1.msra.mxu0 %v37
    %90 = vmatprep.subr.mxu0 0.0
    %91 = vmatpush1.msra.mxu0 %v38
    %92 = vmatprep.subr.mxu0 0.0
    %93 = vmatpush1.msra.mxu0 %v39
    %94 = vmatprep.subr.mxu0 0.0
    %95 = vmatpush1.msra.mxu0 %v40
    %96 = vmatprep.subr.mxu0 0.0
    %97 = vmatpush1.msra.mxu0 0.0
    %98 = vmatprep.subr.mxu0 0.0
    %99 = vmatpush1.msra.mxu0 0.0
    %100 = vmatprep.subr.mxu0 0.0
    %101 = vmatpush1.msra.mxu0 0.0
    %102 = vmatprep.subr.mxu0 0.0
    %103 = vmatpush1.msra.mxu0 0.0
    %104 = vmatprep.subr.mxu0 0.0
    %105 = vmatpush1.msra.mxu0 0.0
    %106 = vmatprep.subr.mxu0 0.0
    %107 = vmatpush1.msra.mxu0 0.0
    %108 = vmatprep.subr.mxu0 0.0
    %109 = vmatpush1.msra.mxu0 0.0
    %110 = vmatprep.subr.mxu0 0.0
    %111 = vmatpush1.msra.mxu0 0.0
    %112 = vmatprep.subr.mxu0 0.0
    %113 = vmatpush1.msra.mxu0 0.0
    %114 = vmatprep.subr.mxu0 0.0
    %115 = vmatpush1.msra.mxu0 0.0
    %116 = vmatprep.subr.mxu0 0.0
    %117 = vmatpush1.msra.mxu0 0.0
    %118 = vmatprep.subr.mxu0 0.0
    %119 = vmatpush1.msra.mxu0 0.0
    %120 = vmatprep.subr.mxu0 0.0
    %121 = vmatpush1.msra.mxu0 0.0
    %122 = vmatprep.subr.mxu0 0.0
    %123 = vmatpush1.msra.mxu0 0.0
    %124 = vmatprep.subr.mxu0 0.0
    %125 = vmatpush1.msra.mxu0 0.0
    %126 = vmatprep.subr.mxu0 0.0
    %127 = vmatpush1.msra.mxu0 0.0
    %128 = vmatprep.mubr.f32.mxu0 0.0
    %129 = vmatmul.mubr.f32.gmra.mrb[0].mxu0 %v59
    %v130 = vpop.f32.mrb[0].mxu0
    %v131 = vadd.f32 %v63, %v130
    %v132 = vpop.f32.mrb[0].mxu0
    %133 = vdwg.mxu0
    %v134 = vtanh.pop %v131
    %v135 = vsel %vm49, %v134, 0.0
    %v136 = vld [vmem:[%s1 + $0x1] sm:$0x1]
    %v137 = vlaneseq
    %v138 = vshrl.u32 %v137, 7
    %v139 = vsub.s32 0, %v138
    %v140 = vrot.slane %v136, %v139
    %v141 = vsel %vm46, %v140, 0.0
    %v142 = vadd.f32 %v141, %v135
    %143 = vmatprep.subr.mxu0 0.0
    %144 = vmatpush1.msra.mxu0 %v25
    %145 = vmatprep.subr.mxu0 0.0
    %146 = vmatpush1.msra.mxu0 %v26
    %147 = vmatprep.subr.mxu0 0.0
    %148 = vmatpush1.msra.mxu0 %v27
    %149 = vmatprep.subr.mxu0 0.0
    %150 = vmatpush1.msra.mxu0 %v28
    %151 = vmatprep.subr.mxu0 0.0
    %152 = vmatpush1.msra.mxu0 %v29
    %153 = vmatprep.subr.mxu0 0.0
    %154 = vmatpush1.msra.mxu0 %v30
    %155 = vmatprep.subr.mxu0 0.0
    %156 = vmatpush1.msra.mxu0 %v31
    %157 = vmatprep.subr.mxu0 0.0
    %158 = vmatpush1.msra.mxu0 %v32
    %159 = vmatprep.subr.mxu0 0.0
    %160 = vmatpush1.msra.mxu0 %v33
    %161 = vmatprep.subr.mxu0 0.0
    %162 = vmatpush1.msra.mxu0 %v34
    %163 = vmatprep.subr.mxu0 0.0
    %164 = vmatpush1.msra.mxu0 %v35
    %165 = vmatprep.subr.mxu0 0.0
    %166 = vmatpush1.msra.mxu0 %v36
    %167 = vmatprep.subr.mxu0 0.0
    %168 = vmatpush1.msra.mxu0 %v37
    %169 = vmatprep.subr.mxu0 0.0
    %170 = vmatpush1.msra.mxu0 %v38
    %171 = vmatprep.subr.mxu0 0.0
    %172 = vmatpush1.msra.mxu0 %v39
    %173 = vmatprep.subr.mxu0 0.0
    %174 = vmatpush1.msra.mxu0 %v40
    %175 = vmatprep.subr.mxu0 0.0
    %176 = vmatpush1.msra.mxu0 0.0
    %177 = vmatprep.subr.mxu0 0.0
    %178 = vmatpush1.msra.mxu0 0.0
    %179 = vmatprep.subr.mxu0 0.0
    %180 = vmatpush1.msra.mxu0 0.0
    %181 = vmatprep.subr.mxu0 0.0
    %182 = vmatpush1.msra.mxu0 0.0
    %183 = vmatprep.subr.mxu0 0.0
    %184 = vmatpush1.msra.mxu0 0.0
    %185 = vmatprep.subr.mxu0 0.0
    %186 = vmatpush1.msra.mxu0 0.0
    %187 = vmatprep.subr.mxu0 0.0
    %188 = vmatpush1.msra.mxu0 0.0
    %189 = vmatprep.subr.mxu0 0.0
    %190 = vmatpush1.msra.mxu0 0.0
    %191 = vmatprep.subr.mxu0 0.0
    %192 = vmatpush1.msra.mxu0 0.0
    %193 = vmatprep.subr.mxu0 0.0
    %194 = vmatpush1.msra.mxu0 0.0
    %195 = vmatprep.subr.mxu0 0.0
    %196 = vmatpush1.msra.mxu0 0.0
    %197 = vmatprep.subr.mxu0 0.0
    %198 = vmatpush1.msra.mxu0 0.0
    %199 = vmatprep.subr.mxu0 0.0
    %200 = vmatpush1.msra.mxu0 0.0
    %201 = vmatprep.subr.mxu0 0.0
    %202 = vmatpush1.msra.mxu0 0.0
    %203 = vmatprep.subr.mxu0 0.0
    %204 = vmatpush1.msra.mxu0 0.0
    %205 = vmatprep.subr.mxu0 0.0
    %206 = vmatpush1.msra.mxu0 0.0
    %207 = vmatprep.mubr.f32.mxu0 0.0
    %208 = vmatmul.mubr.f32.gmra.mrb[0].mxu0 %v142
    %v209 = vpop.f32.mrb[0].mxu0
    %v210 = vadd.f32 %v63, %v209
    %v211 = vpop.f32.mrb[0].mxu0
    %212 = vdwg.mxu0
    %v213 = vtanh.pop %v210
    %v214 = vsel %vm49, %v213, 0.0
    %v215 = vadd.f32 %v141, %v214
    %v216 = vlaneseq
    %v217 = vshrl.u32 %v216, 7
    %v218 = vsub.s32 0, %v217
    %v219 = vrot.slane %v42, %v218
    %220 = vmatprep.subr.mxu0 0.0
    %221 = vmatpush1.msra.mxu0 %v25
    %222 = vmatprep.subr.mxu0 0.0
    %223 = vmatpush1.msra.mxu0 %v26
    %224 = vmatprep.subr.mxu0 0.0
    %225 = vmatpush1.msra.mxu0 %v27
    %226 = vmatprep.subr.mxu0 0.0
    %227 = vmatpush1.msra.mxu0 %v28
    %228 = vmatprep.subr.mxu0 0.0
    %229 = vmatpush1.msra.mxu0 %v29
    %230 = vmatprep.subr.mxu0 0.0
    %231 = vmatpush1.msra.mxu0 %v30
    %232 = vmatprep.subr.mxu0 0.0
    %233 = vmatpush1.msra.mxu0 %v31
    %234 = vmatprep.subr.mxu0 0.0
    %235 = vmatpush1.msra.mxu0 %v32
    %236 = vmatprep.subr.mxu0 0.0
    %237 = vmatpush1.msra.mxu0 %v33
    %238 = vmatprep.subr.mxu0 0.0
    %239 = vmatpush1.msra.mxu0 %v34
    %240 = vmatprep.subr.mxu0 0.0
    %241 = vmatpush1.msra.mxu0 %v35
    %242 = vmatprep.subr.mxu0 0.0
    %243 = vmatpush1.msra.mxu0 %v36
    %244 = vmatprep.subr.mxu0 0.0
    %245 = vmatpush1.msra.mxu0 %v37
    %246 = vmatprep.subr.mxu0 0.0
    %247 = vmatpush1.msra.mxu0 %v38
    %248 = vmatprep.subr.mxu0 0.0
    %249 = vmatpush1.msra.mxu0 %v39
    %250 = vmatprep.subr.mxu0 0.0
    %251 = vmatpush1.msra.mxu0 %v40
    %252 = vmatprep.subr.mxu0 0.0
    %253 = vmatpush1.msra.mxu0 0.0
    %254 = vmatprep.subr.mxu0 0.0
    %255 = vmatpush1.msra.mxu0 0.0
    %256 = vmatprep.subr.mxu0 0.0
    %257 = vmatpush1.msra.mxu0 0.0
    %258 = vmatprep.subr.mxu0 0.0
    %259 = vmatpush1.msra.mxu0 0.0
    %260 = vmatprep.subr.mxu0 0.0
    %261 = vmatpush1.msra.mxu0 0.0
    %262 = vmatprep.subr.mxu0 0.0
    %263 = vmatpush1.msra.mxu0 0.0
    %264 = vmatprep.subr.mxu0 0.0
    %265 = vmatpush1.msra.mxu0 0.0
    %266 = vmatprep.subr.mxu0 0.0
    %267 = vmatpush1.msra.mxu0 0.0
    %268 = vmatprep.subr.mxu0 0.0
    %269 = vmatpush1.msra.mxu0 0.0
    %270 = vmatprep.subr.mxu0 0.0
    %271 = vmatpush1.msra.mxu0 0.0
    %272 = vmatprep.subr.mxu0 0.0
    %273 = vmatpush1.msra.mxu0 0.0
    %274 = vmatprep.subr.mxu0 0.0
    %275 = vmatpush1.msra.mxu0 0.0
    %276 = vmatprep.subr.mxu0 0.0
    %277 = vmatpush1.msra.mxu0 0.0
    %278 = vmatprep.subr.mxu0 0.0
    %279 = vmatpush1.msra.mxu0 0.0
    %280 = vmatprep.subr.mxu0 0.0
    %281 = vmatpush1.msra.mxu0 0.0
    %282 = vmatprep.subr.mxu0 0.0
    %283 = vmatpush1.msra.mxu0 0.0
    %284 = vmatprep.mubr.f32.mxu0 0.0
    %285 = vmatmul.mubr.f32.gmra.mrb[0].mxu0 %v215
    %v286 = vpop.f32.mrb[0].mxu0
    %v287 = vadd.f32 %v219, %v286
    %v288 = vpop.f32.mrb[0].mxu0
    %289 = vdwg.mxu0
    %v290 = vtanh.pop %v287
    %v291 = vsel %vm52, %v290, 0.0
    %v292 = vlaneseq
    %v293 = vshrl.u32 %v292, 7
    %v294 = vsub.s32 0, %v293
    %v295 = vrot.slane %v43, %v294
    %296 = vmatprep.subr.mxu0 0.0
    %297 = vmatpush1.msra.mxu0 %v25
    %298 = vmatprep.subr.mxu0 0.0
    %299 = vmatpush1.msra.mxu0 %v26
    %300 = vmatprep.subr.mxu0 0.0
    %301 = vmatpush1.msra.mxu0 %v27
    %302 = vmatprep.subr.mxu0 0.0
    %303 = vmatpush1.msra.mxu0 %v28
    %304 = vmatprep.subr.mxu0 0.0
    %305 = vmatpush1.msra.mxu0 %v29
    %306 = vmatprep.subr.mxu0 0.0
    %307 = vmatpush1.msra.mxu0 %v30
    %308 = vmatprep.subr.mxu0 0.0
    %309 = vmatpush1.msra.mxu0 %v31
    %310 = vmatprep.subr.mxu0 0.0
    %311 = vmatpush1.msra.mxu0 %v32
    %312 = vmatprep.subr.mxu0 0.0
    %313 = vmatpush1.msra.mxu0 %v33
    %314 = vmatprep.subr.mxu0 0.0
    %315 = vmatpush1.msra.mxu0 %v34
    %316 = vmatprep.subr.mxu0 0.0
    %317 = vmatpush1.msra.mxu0 %v35
    %318 = vmatprep.subr.mxu0 0.0
    %319 = vmatpush1.msra.mxu0 %v36
    %320 = vmatprep.subr.mxu0 0.0
    %321 = vmatpush1.msra.mxu0 %v37
    %322 = vmatprep.subr.mxu0 0.0
    %323 = vmatpush1.msra.mxu0 %v38
    %324 = vmatprep.subr.mxu0 0.0
    %325 = vmatpush1.msra.mxu0 %v39
    %326 = vmatprep.subr.mxu0 0.0
    %327 = vmatpush1.msra.mxu0 %v40
    %328 = vmatprep.subr.mxu0 0.0
    %329 = vmatpush1.msra.mxu0 0.0
    %330 = vmatprep.subr.mxu0 0.0
    %331 = vmatpush1.msra.mxu0 0.0
    %332 = vmatprep.subr.mxu0 0.0
    %333 = vmatpush1.msra.mxu0 0.0
    %334 = vmatprep.subr.mxu0 0.0
    %335 = vmatpush1.msra.mxu0 0.0
    %336 = vmatprep.subr.mxu0 0.0
    %337 = vmatpush1.msra.mxu0 0.0
    %338 = vmatprep.subr.mxu0 0.0
    %339 = vmatpush1.msra.mxu0 0.0
    %340 = vmatprep.subr.mxu0 0.0
    %341 = vmatpush1.msra.mxu0 0.0
    %342 = vmatprep.subr.mxu0 0.0
    %343 = vmatpush1.msra.mxu0 0.0
    %344 = vmatprep.subr.mxu0 0.0
    %345 = vmatpush1.msra.mxu0 0.0
    %346 = vmatprep.subr.mxu0 0.0
    %347 = vmatpush1.msra.mxu0 0.0
    %348 = vmatprep.subr.mxu0 0.0
    %349 = vmatpush1.msra.mxu0 0.0
    %350 = vmatprep.subr.mxu0 0.0
    %351 = vmatpush1.msra.mxu0 0.0
    %352 = vmatprep.subr.mxu0 0.0
    %353 = vmatpush1.msra.mxu0 0.0
    %354 = vmatprep.subr.mxu0 0.0
    %355 = vmatpush1.msra.mxu0 0.0
    %356 = vmatprep.subr.mxu0 0.0
    %357 = vmatpush1.msra.mxu0 0.0
    %358 = vmatprep.subr.mxu0 0.0
    %359 = vmatpush1.msra.mxu0 0.0
    %360 = vmatprep.mubr.f32.mxu0 0.0
    %361 = vmatmul.mubr.f32.gmra.mrb[0].mxu0 %v291
    %v362 = vpop.f32.mrb[0].mxu0
    %v363 = vadd.f32 %v295, %v362
    %v364 = vpop.f32.mrb[0].mxu0
    %365 = vdwg.mxu0
    %v366 = vsel %vm46, %v363, 0.0
    %v367 = vadd.f32 %v366, %v291
    %368 = vmatprep.subr.mxu0 0.0
    %369 = vmatpush1.msra.mxu0 %v25
    %370 = vmatprep.subr.mxu0 0.0
    %371 = vmatpush1.msra.mxu0 %v26
    %372 = vmatprep.subr.mxu0 0.0
    %373 = vmatpush1.msra.mxu0 %v27
    %374 = vmatprep.subr.mxu0 0.0
    %375 = vmatpush1.msra.mxu0 %v28
    %376 = vmatprep.subr.mxu0 0.0
    %377 = vmatpush1.msra.mxu0 %v29
    %378 = vmatprep.subr.mxu0 0.0
    %379 = vmatpush1.msra.mxu0 %v30
    %380 = vmatprep.subr.mxu0 0.0
    %381 = vmatpush1.msra.mxu0 %v31
    %382 = vmatprep.subr.mxu0 0.0
    %383 = vmatpush1.msra.mxu0 %v32
    %384 = vmatprep.subr.mxu0 0.0
    %385 = vmatpush1.msra.mxu0 %v33
    %386 = vmatprep.subr.mxu0 0.0
    %387 = vmatpush1.msra.mxu0 %v34
    %388 = vmatprep.subr.mxu0 0.0
    %389 = vmatpush1.msra.mxu0 %v35
    %390 = vmatprep.subr.mxu0 0.0
    %391 = vmatpush1.msra.mxu0 %v36
    %392 = vmatprep.subr.mxu0 0.0
    %393 = vmatpush1.msra.mxu0 %v37
    %394 = vmatprep.subr.mxu0 0.0
    %395 = vmatpush1.msra.mxu0 %v38
    %396 = vmatprep.subr.mxu0 0.0
    %397 = vmatpush1.msra.mxu0 %v39
    %398 = vmatprep.subr.mxu0 0.0
    %399 = vmatpush1.msra.mxu0 %v40
    %400 = vmatprep.subr.mxu0 0.0
    %401 = vmatpush1.msra.mxu0 0.0
    %402 = vmatprep.subr.mxu0 0.0
    %403 = vmatpush1.msra.mxu0 0.0
    %404 = vmatprep.subr.mxu0 0.0
    %405 = vmatpush1.msra.mxu0 0.0
    %406 = vmatprep.subr.mxu0 0.0
    %407 = vmatpush1.msra.mxu0 0.0
    %408 = vmatprep.subr.mxu0 0.0
    %409 = vmatpush1.msra.mxu0 0.0
    %410 = vmatprep.subr.mxu0 0.0
    %411 = vmatpush1.msra.mxu0 0.0
    %412 = vmatprep.subr.mxu0 0.0
    %413 = vmatpush1.msra.mxu0 0.0
    %414 = vmatprep.subr.mxu0 0.0
    %415 = vmatpush1.msra.mxu0 0.0
    %416 = vmatprep.subr.mxu0 0.0
    %417 = vmatpush1.msra.mxu0 0.0
    %418 = vmatprep.subr.mxu0 0.0
    %419 = vmatpush1.msra.mxu0 0.0
    %420 = vmatprep.subr.mxu0 0.0
    %421 = vmatpush1.msra.mxu0 0.0
    %422 = vmatprep.subr.mxu0 0.0
    %423 = vmatpush1.msra.mxu0 0.0
    %424 = vmatprep.subr.mxu0 0.0
    %425 = vmatpush1.msra.mxu0 0.0
    %426 = vmatprep.subr.mxu0 0.0
    %427 = vmatpush1.msra.mxu0 0.0
    %428 = vmatprep.subr.mxu0 0.0
    %429 = vmatpush1.msra.mxu0 0.0
    %430 = vmatprep.subr.mxu0 0.0
    %431 = vmatpush1.msra.mxu0 0.0
    %432 = vmatprep.mubr.f32.mxu0 0.0
    %433 = vmatmul.mubr.f32.gmra.mrb[0].mxu0 %v367
    %v434 = vpop.f32.mrb[0].mxu0
    %v435 = vadd.f32 %v219, %v434
    %v436 = vpop.f32.mrb[0].mxu0
    %437 = vdwg.mxu0
    %v438 = vtanh.pop %v435
    %v439 = vsel %vm52, %v438, 0.0
    %440 = vmatprep.subr.mxu0 0.0
    %441 = vmatpush1.msra.mxu0 %v25
    %442 = vmatprep.subr.mxu0 0.0
    %443 = vmatpush1.msra.mxu0 %v26
    %444 = vmatprep.subr.mxu0 0.0
    %445 = vmatpush1.msra.mxu0 %v27
    %446 = vmatprep.subr.mxu0 0.0
    %447 = vmatpush1.msra.mxu0 %v28
    %448 = vmatprep.subr.mxu0 0.0
    %449 = vmatpush1.msra.mxu0 %v29
    %450 = vmatprep.subr.mxu0 0.0
    %451 = vmatpush1.msra.mxu0 %v30
    %452 = vmatprep.subr.mxu0 0.0
    %453 = vmatpush1.msra.mxu0 %v31
    %454 = vmatprep.subr.mxu0 0.0
    %455 = vmatpush1.msra.mxu0 %v32
    %456 = vmatprep.subr.mxu0 0.0
    %457 = vmatpush1.msra.mxu0 %v33
    %458 = vmatprep.subr.mxu0 0.0
    %459 = vmatpush1.msra.mxu0 %v34
    %460 = vmatprep.subr.mxu0 0.0
    %461 = vmatpush1.msra.mxu0 %v35
    %462 = vmatprep.subr.mxu0 0.0
    %463 = vmatpush1.msra.mxu0 %v36
    %464 = vmatprep.subr.mxu0 0.0
    %465 = vmatpush1.msra.mxu0 %v37
    %466 = vmatprep.subr.mxu0 0.0
    %467 = vmatpush1.msra.mxu0 %v38
    %468 = vmatprep.subr.mxu0 0.0
    %469 = vmatpush1.msra.mxu0 %v39
    %470 = vmatprep.subr.mxu0 0.0
    %471 = vmatpush1.msra.mxu0 %v40
    %472 = vmatprep.subr.mxu0 0.0
    %473 = vmatpush1.msra.mxu0 0.0
    %474 = vmatprep.subr.mxu0 0.0
    %475 = vmatpush1.msra.mxu0 0.0
    %476 = vmatprep.subr.mxu0 0.0
    %477 = vmatpush1.msra.mxu0 0.0
    %478 = vmatprep.subr.mxu0 0.0
    %479 = vmatpush1.msra.mxu0 0.0
    %480 = vmatprep.subr.mxu0 0.0
    %481 = vmatpush1.msra.mxu0 0.0
    %482 = vmatprep.subr.mxu0 0.0
    %483 = vmatpush1.msra.mxu0 0.0
    %484 = vmatprep.subr.mxu0 0.0
    %485 = vmatpush1.msra.mxu0 0.0
    %486 = vmatprep.subr.mxu0 0.0
    %487 = vmatpush1.msra.mxu0 0.0
    %488 = vmatprep.subr.mxu0 0.0
    %489 = vmatpush1.msra.mxu0 0.0
    %490 = vmatprep.subr.mxu0 0.0
    %491 = vmatpush1.msra.mxu0 0.0
    %492 = vmatprep.subr.mxu0 0.0
    %493 = vmatpush1.msra.mxu0 0.0
    %494 = vmatprep.subr.mxu0 0.0
    %495 = vmatpush1.msra.mxu0 0.0
    %496 = vmatprep.subr.mxu0 0.0
    %497 = vmatpush1.msra.mxu0 0.0
    %498 = vmatprep.subr.mxu0 0.0
    %499 = vmatpush1.msra.mxu0 0.0
    %500 = vmatprep.subr.mxu0 0.0
    %501 = vmatpush1.msra.mxu0 0.0
    %502 = vmatprep.subr.mxu0 0.0
    %503 = vmatpush1.msra.mxu0 0.0
    %504 = vmatprep.mubr.f32.mxu0 0.0
    %505 = vmatmul.mubr.f32.gmra.mrb[0].mxu0 %v439
    %v506 = vpop.f32.mrb[0].mxu0
    %v507 = vadd.f32 %v295, %v506
    %v508 = vpop.f32.mrb[0].mxu0
    %509 = vdwg.mxu0
    %v510 = vsel %vm46, %v507, 0.0
    %v511 = vlaneseq
    %v512 = vshrl.u32 %v511, 7
    %vm513 = vcmp.eq.s32.totalorder %v512, 0
    %vm514 = vcmp.eq.s32.totalorder %v512, 1
    %v515 = vsel %vm514, %v510, 0.0
    %v516 = vsel %vm513, %v366, %v515
    %517 = vst [vmem:[%s2] sm:$0xff] %v516
    // Predicated region
    $region14: #{encoder_decoder_forward.1} parent=1 // pred_check
      _
    $region15: #{encoder_decoder_forward.1} parent=1 // pred_check_branch
      %519 = sbr.rel (0) target = $region17
    $region16: #{encoder_decoder_forward.1} parent=1 // pred_region
      _
    $region17: #{encoder_decoder_forward.1} parent=1 // pred_fallthru
      _
    // Predicated region
    $region18: #{encoder_decoder_forward.1} parent=1 // pred_check
      _
    $region19: #{encoder_decoder_forward.1} parent=1 // pred_check_branch
      %521 = sbr.rel (0) target = $region21
    $region20: #{encoder_decoder_forward.1} parent=1 // pred_region
      _
    $region21: #{encoder_decoder_forward.1} parent=1 // pred_fallthru
      _
    %522 = vsyncpa [#allocation3], 1

</llo_original>
